<compile_context>
chip_gen: v6e
topology: v6e:2x2x1
jax: 0.10.0
libtpu: 0.0.40
codegen_flags: <defaults>
</compile_context>

<pallas_src>
import jax
import jax.numpy as jnp
from jax.experimental import pallas as pl
from jax.experimental.pallas import tpu as pltpu


def _round_up(x, m):
    return ((x + m - 1) // m) * m


def _cdiv(a, b):
    return -(-a // b)


def _pick_tn(n, tn_max=512):
    """Output-column tile: lane-dense (128-multiple), minimal wasted columns."""
    n128 = _round_up(n, 128)
    if n128 <= tn_max:
        return n128
    best, best_waste = 128, None
    for cand in (512, 384, 256, 128):
        if cand > tn_max:
            continue
        waste = cand * _cdiv(n, cand) - n
        if best_waste is None or waste < best_waste:
            best, best_waste = cand, waste
    return best


def _tdnn_kernel(x_ref, w_ref, b_ref, o_ref):
    # x_ref: (1, tm, K)   spliced context frames for this seq tile.
    # w_ref: (K, tn)      fused (K = C*D) weight slab for this N tile.
    # b_ref: (1, tn)      bias (f32).
    # o_ref: (1, tm, tn)  output tile (bf16 by default).
    acc = jnp.dot(x_ref[0], w_ref[...],
                  preferred_element_type=jnp.float32)      # single MXU dot
    acc = acc + b_ref[...]                                  # (1, tn) broadcast
    o_ref[0] = jnp.maximum(acc, 0.0).astype(o_ref.dtype)


def prepare_tdnn_params(weight, bias, *, compute_dtype=jnp.bfloat16):
    """One-time relayout of nn.Linear params.

    weight: (N, C*D) in PyTorch unfold ordering (k = j*D + d); bias: (N,).
    Returns (w_t, b2) with w_t: (C*D, N) in compute_dtype, b2: (1, N) f32.
    compute_dtype=float32 is a debug path (multi-pass MXU, several x slower).
    """
    n, _ = weight.shape
    w_t = jnp.asarray(weight).T.astype(compute_dtype)       # (C*D, N)
    b2 = jnp.asarray(bias).reshape(1, n).astype(jnp.float32)
    return w_t, b2


def tdnn_forward(x, w_t, b2, *, context_size=5, dilation=1,
                 tm=512, tn_max=512, out_dtype=None):
    """x: (B, T, D) float; w_t/b2 from prepare_tdnn_params. Returns (B, L, N)."""
    B, T, D = x.shape
    K, N = w_t.shape
    assert K == context_size * D, "weight shape mismatch"
    L = T - dilation * (context_size - 1)
    assert L > 0, "sequence too short for context/dilation"

    compute_dtype = w_t.dtype
    if out_dtype is None:
        out_dtype = compute_dtype                            # bf16 by default

    # Splice the C context frames (ordering j*D + d matches nn.Linear weight).
    # x traffic is tiny relative to the output (D << N), so this wrapper-side
    # unfold is cheaper than per-frame small-K dots in the kernel.
    x_unf = jnp.concatenate(
        [x[:, j * dilation: j * dilation + L, :] for j in range(context_size)],
        axis=-1).astype(compute_dtype)                       # (B, L, K)

    # ---- tiling ----
    tn = _pick_tn(N, tn_max)
    tm = _round_up(max(tm, 8), 8)
    if L <= tm:
        tm = L                                               # single exact tile
    nt_n = _cdiv(N, tn)
    nt_seq = _cdiv(L, tm)

    out_itemsize = jnp.dtype(out_dtype).itemsize
    flops = 2 * B * L * K * N
    bytes_accessed = (x_unf.size * x_unf.dtype.itemsize
                      + w_t.size * w_t.dtype.itemsize
                      + b2.size * 4
                      + B * L * N * out_itemsize)

    return pl.pallas_call(
        _tdnn_kernel,
        out_shape=jax.ShapeDtypeStruct((B, L, N), out_dtype),
        grid_spec=pltpu.PrefetchScalarGridSpec(
            num_scalar_prefetch=0,
            grid=(B, nt_n, nt_seq),            # seq fastest -> weight resident
            in_specs=[
                pl.BlockSpec((1, tm, K), lambda b, n, i: (b, i, 0)),
                pl.BlockSpec((K, tn), lambda b, n, i: (0, n)),
                pl.BlockSpec((1, tn), lambda b, n, i: (0, n)),
            ],
            out_specs=pl.BlockSpec((1, tm, tn), lambda b, n, i: (b, i, n)),
        ),
        compiler_params=pltpu.CompilerParams(
            dimension_semantics=("parallel", "parallel", "parallel")),
        cost_estimate=pl.CostEstimate(flops=flops, transcendentals=0,
                                      bytes_accessed=bytes_accessed),
    )(x_unf, w_t, b2)


if __name__ == "__main__":
    # Small, deterministic configuration (module defaults: D=23, N=512, C=5).
    batch, seq_len, input_dim = 2, 16, 23
    output_dim, context_size, dilation = 512, 5, 1

    key = jax.random.PRNGKey(0)
    kx, kw, kb = jax.random.split(key, 3)

    x = jax.random.normal(kx, (batch, seq_len, input_dim), dtype=jnp.float32)
    fan_in = input_dim * context_size
    bound = 1.0 / (fan_in ** 0.5)
    weight = jax.random.uniform(kw, (output_dim, fan_in),
                                minval=-bound, maxval=bound, dtype=jnp.float32)
    bias = jax.random.uniform(kb, (output_dim,),
                              minval=-bound, maxval=bound, dtype=jnp.float32)

    # Pure-JAX reference (explicit frame splice, same math).
    L = seq_len - dilation * (context_size - 1)
    frames = [x[:, j * dilation: j * dilation + L, :] for j in range(context_size)]
    xu = jnp.concatenate(frames, axis=-1)                    # (B, L, C*D)

    def reference(dtype):
        xw = xu.astype(dtype).astype(jnp.float32)
        ww = weight.astype(dtype).astype(jnp.float32)
        return jnp.maximum(jnp.einsum("blc,nc->bln", xw, ww) + bias, 0.0)

    # f32 debug path: tight tolerance.
    w_f32, b_f32 = prepare_tdnn_params(weight, bias, compute_dtype=jnp.float32)
    out_f32 = tdnn_forward(x, w_f32, b_f32, context_size=context_size,
                           dilation=dilation)
    out_f32 = jax.block_until_ready(out_f32)
    assert out_f32.shape == (batch, L, output_dim)
    assert jnp.allclose(out_f32, reference(jnp.float32), atol=1e-5, rtol=1e-5)

    # bf16 fast path (default): bf16 operands, f32 MXU accumulation, bf16 out.
    w_bf, b_bf = prepare_tdnn_params(weight, bias)           # once, reused
    out_bf = tdnn_forward(x, w_bf, b_bf, context_size=context_size,
                          dilation=dilation)
    out_bf = jax.block_until_ready(out_bf)
    assert out_bf.shape == (batch, L, output_dim)
    assert out_bf.dtype == jnp.bfloat16
    assert jnp.allclose(out_bf.astype(jnp.float32), reference(jnp.bfloat16),
                        atol=2e-2, rtol=2e-2)

    print("KERNEL_OK")
</pallas_src>

<mosaic_0001>
module attributes {stable_mosaic.version = 11 : i64} {
  func.func @_tdnn_kernel(%arg0: i32, %arg1: i32, %arg2: i32, %arg3: memref<1x12x115xf32, #tpu.memory_space<vmem>>, %arg4: memref<115x512xf32, #tpu.memory_space<vmem>>, %arg5: memref<1x512xf32, #tpu.memory_space<vmem>>, %arg6: memref<1x12x512xf32, #tpu.memory_space<vmem>>) attributes {dimension_semantics = [#tpu.dimension_semantics<parallel>, #tpu.dimension_semantics<parallel>, #tpu.dimension_semantics<parallel>], iteration_bounds = array<i64: 2, 1, 1>, scalar_prefetch = 0 : i64, scratch_operands = 0 : i64, tpu.core_type = #tpu.core_type<tc>, window_params = [{transform_indices = @transform_0, window_bounds = array<i64: 1, 12, 115>}, {transform_indices = @transform_1, window_bounds = array<i64: 115, 512>}, {transform_indices = @transform_2, window_bounds = array<i64: 1, 512>}, {transform_indices = @transform_3, window_bounds = array<i64: 1, 12, 512>}]} {
    %c0 = arith.constant 0 : index
    %c0_0 = arith.constant 0 : index
    %c0_1 = arith.constant 0 : index
    %0 = vector.load %arg3[%c0, %c0_0, %c0_1] : memref<1x12x115xf32, #tpu.memory_space<vmem>>, vector<1x12x115xf32>
    %1 = vector.shape_cast %0 : vector<1x12x115xf32> to vector<12x115xf32>
    %c0_2 = arith.constant 0 : index
    %c0_3 = arith.constant 0 : index
    %2 = vector.load %arg4[%c0_2, %c0_3] : memref<115x512xf32, #tpu.memory_space<vmem>>, vector<115x512xf32>
    %cst = arith.constant dense<0.000000e+00> : vector<12x512xf32>
    %3 = tpu.matmul %1, %2, %cst {dimension_numbers = #tpu.dot_dimension_numbers<[1], [0], [0], [1], [0, 0, 1, 1], [], []>} : vector<12x115xf32>, vector<115x512xf32>, vector<12x512xf32> -> vector<12x512xf32>
    %c0_4 = arith.constant 0 : index
    %c0_5 = arith.constant 0 : index
    %4 = vector.load %arg5[%c0_4, %c0_5] : memref<1x512xf32, #tpu.memory_space<vmem>>, vector<1x512xf32>
    %5 = vector.broadcast %4 : vector<1x512xf32> to vector<12x512xf32>
    %6 = arith.addf %3, %5 : vector<12x512xf32>
    %cst_6 = arith.constant 0.000000e+00 : f32
    %7 = vector.broadcast %cst_6 : f32 to vector<12x512xf32>
    %8 = arith.maximumf %6, %7 : vector<12x512xf32>
    %c0_7 = arith.constant 0 : index
    %c0_8 = arith.constant 0 : index
    %c0_9 = arith.constant 0 : index
    %9 = vector.load %arg6[%c0_7, %c0_8, %c0_9] : memref<1x12x512xf32, #tpu.memory_space<vmem>>, vector<1x12x512xf32>
    %10 = vector.shape_cast %9 : vector<1x12x512xf32> to vector<12x512xf32>
    %11 = vector.shape_cast %8 : vector<12x512xf32> to vector<1x12x512xf32>
    tpu.vector_store %arg6[%c0_7, %c0_8, %c0_9], %11 {strides = array<i32>} : memref<1x12x512xf32, #tpu.memory_space<vmem>>, vector<1x12x512xf32>,
    return
  }
  func.func @transform_0(%arg0: i32, %arg1: i32, %arg2: i32) -> (i32, i32, i32) {
    %c0_i32 = arith.constant 0 : i32
    %c0_i32_0 = arith.constant 0 : i32
    return %arg0, %arg2, %c0_i32 : i32, i32, i32
  }
  func.func @transform_1(%arg0: i32, %arg1: i32, %arg2: i32) -> (i32, i32) {
    %c0_i32 = arith.constant 0 : i32
    %c0_i32_0 = arith.constant 0 : i32
    return %c0_i32, %arg1 : i32, i32
  }
  func.func @transform_2(%arg0: i32, %arg1: i32, %arg2: i32) -> (i32, i32) {
    %c0_i32 = arith.constant 0 : i32
    %c0_i32_0 = arith.constant 0 : i32
    return %c0_i32, %arg1 : i32, i32
  }
  func.func @transform_3(%arg0: i32, %arg1: i32, %arg2: i32) -> (i32, i32, i32) {
    %c0_i32 = arith.constant 0 : i32
    return %arg0, %arg2, %arg1 : i32, i32, i32
  }
}

</mosaic_0001>

<llo_original>
// kernel: tpu_custom_call.1
$region0: #{tpu_custom_call.1}
  #allocation0 [shape = 'u32[]', space=smem, size = 0x4, offset = 0x4, fixed_abs, tag = 'smem constant byte address 0x4 - core index']
  #allocation1 [shape = 'u32[144,128]{1,0:T(1,128)}', space=vmem, size = 0x12000, scoped, tag = 'internal scratch']
  %s0 = inlined_call_operand.vmem [shape: f32[2,12,115], index: 0, kind: input, shape index: {}]
  %s1 = inlined_call_operand.hbm [shape: f32[115,512], index: 1, kind: input, shape index: {}]
  %s2 = inlined_call_operand.vmem [shape: f32[1,512], index: 2, kind: input, shape index: {}]
  %s3 = inlined_call_operand.vmem [shape: f32[2,12,512], index: 3, kind: output, shape index: {}]
  %s4 = sld [smem:[#allocation0]]
  $region49: #{tpu_custom_call.1} parent=0
    _
  %s6 = ssub.s32 1, %s4
  %s7 = scalar_select 0, %s6, %s4
  $region1: #{tpu_custom_call.1} parent=0
    #allocation2 [shape = 'u8[245760]{0}', space=vmem, size = 0x3c000, scoped, tag = 'input window, operand 1, single buffered']
    #allocation3 [shape = 's32[2]{0}', space=sflag, size = 0x8, scoped, tag = 'scoped memory for tpu_custom_call.1']
    %8 = vsyncpa [#allocation3], 0
    loop: start=0, step=1, limit=4
    $region2: #{tpu_custom_call.1} parent=1 // loop_pre_header
      _
    $region3: #{tpu_custom_call.1} parent=1 // loop_header
      %s10 = sphi 0, %s14
      %p11 = scmp.ge.s32.totalorder %s10, 4
      %s17 = sphi 0, %s36
      %s18 = sphi 0, %s32
      %s19 = sphi 0, %s28
      %s20 = sphi 0, %s17
      %s21 = sphi 0, %s18
      %s22 = sphi 0, %s19
      %s23 = sphi 0, %s20
      %s24 = sphi 0, %s21
      %s25 = sphi 0, %s22
      %s41 = sphi 0, %s43
      %s44 = sphi 0, %s41
      %s45 = sphi 0, %s44
      %s61 = sphi 0, %s45
      %s67 = sphi 0, %s69
      %s70 = sphi 0, %s67
      %s71 = sphi 0, %s70
      %s87 = sphi 0, %s71
      %s93 = sphi 0, %s95
      %s96 = sphi 0, %s93
      %s97 = sphi 0, %s96
      %s113 = sphi 0, %s97
      %s123 = sphi 0, %s125
      %s126 = sphi 0, %s123
      %s127 = sphi 0, %s126
      %s143 = sphi 0, %s127
    $region4: #{tpu_custom_call.1} parent=1 // loop_header_branch
      %13 = sbr.rel (%p11) target = $region8
    $region5: #{tpu_custom_call.1} parent=1 // loop_body
      %s15 = ssub.s32 %s10, 1
      %s16 = ssub.s32 %s10, 2
      %s26 = sadd.s32 1, %s19
      %p27 = scmp.ge.s32.totalorder %s26, 1
      %s28 = scalar_select %p27, 0, %s26
      %s29 = sadd.s32 1, %s18
      %s30 = scalar_select %p27, %s29, %s18
      %p31 = scmp.ge.s32.totalorder %s30, 1
      %s32 = scalar_select %p31, 0, %s30
      %s33 = sadd.s32 1, %s17
      %s34 = scalar_select %p31, %s33, %s17
      %p35 = scmp.ge.s32.totalorder %s34, 2
      %s36 = scalar_select %p35, 0, %s34
      %s37 = ssub.s32 %s17, %s36
      %s38 = ssub.s32 %s19, %s28
      %s39 = sor.u32 %s37, %s38
      %p40 = scmp.eq.s32.totalorder %s39, 0
      %s42 = sadd.s32 %s41, 1
      %s43 = scalar_select %p40, %s41, %s42
      %p46 = pneg %p40
      %p47 = scmp.eq.s32.totalorder %s10, 1
      %p48 = por %p46, %p47
      %p49 = scmp.ne.s32.totalorder %s41, %s44
      %p50 = scmp.eq.s32.totalorder %s10, 0
      %p51 = por %p49, %p50
      %p52 = scmp.ne.s32.totalorder %s41, %s44
      %p53 = scmp.eq.s32.totalorder %s15, 1
      %p54 = por %p52, %p53
      %p55 = scmp.ne.s32.totalorder %s44, %s45
      %p56 = scmp.eq.s32.totalorder %s15, 0
      %p57 = por %p55, %p56
      %p58 = scmp.ne.s32.totalorder %s44, %s45
      %p59 = scmp.eq.s32.totalorder %s16, 1
      %p60 = por %p58, %p59
      %p62 = scmp.ne.s32.totalorder %s45, %s61
      %p63 = scmp.eq.s32.totalorder %s16, 0
      %p64 = por %p62, %p63
      %s65 = ssub.s32 %s18, %s32
      %p66 = scmp.eq.s32.totalorder %s65, 0
      %s68 = sadd.s32 %s67, 1
      %s69 = scalar_select %p66, %s67, %s68
      %p72 = pneg %p66
      %p73 = scmp.eq.s32.totalorder %s10, 1
      %p74 = por %p72, %p73
      %p75 = scmp.ne.s32.totalorder %s67, %s70
      %p76 = scmp.eq.s32.totalorder %s10, 0
      %p77 = por %p75, %p76
      %p78 = scmp.ne.s32.totalorder %s67, %s70
      %p79 = scmp.eq.s32.totalorder %s15, 1
      %p80 = por %p78, %p79
      %p81 = scmp.ne.s32.totalorder %s70, %s71
      %p82 = scmp.eq.s32.totalorder %s15, 0
      %p83 = por %p81, %p82
      %p84 = scmp.ne.s32.totalorder %s70, %s71
      %p85 = scmp.eq.s32.totalorder %s16, 1
      %p86 = por %p84, %p85
      %p88 = scmp.ne.s32.totalorder %s71, %s87
      %p89 = scmp.eq.s32.totalorder %s16, 0
      %p90 = por %p88, %p89
      %s91 = ssub.s32 %s18, %s32
      %p92 = scmp.eq.s32.totalorder %s91, 0
      %s94 = sadd.s32 %s93, 1
      %s95 = scalar_select %p92, %s93, %s94
      %p98 = pneg %p92
      %p99 = scmp.eq.s32.totalorder %s10, 1
      %p100 = por %p98, %p99
      %p101 = scmp.ne.s32.totalorder %s93, %s96
      %p102 = scmp.eq.s32.totalorder %s10, 0
      %p103 = por %p101, %p102
      %p104 = scmp.ne.s32.totalorder %s93, %s96
      %p105 = scmp.eq.s32.totalorder %s15, 1
      %p106 = por %p104, %p105
      %p107 = scmp.ne.s32.totalorder %s96, %s97
      %p108 = scmp.eq.s32.totalorder %s15, 0
      %p109 = por %p107, %p108
      %p110 = scmp.ne.s32.totalorder %s96, %s97
      %p111 = scmp.eq.s32.totalorder %s16, 1
      %p112 = por %p110, %p111
      %p114 = scmp.ne.s32.totalorder %s97, %s113
      %p115 = scmp.eq.s32.totalorder %s16, 0
      %p116 = por %p114, %p115
      %s117 = ssub.s32 %s17, %s36
      %s118 = ssub.s32 %s19, %s28
      %s119 = sor.u32 %s117, %s118
      %s120 = ssub.s32 %s18, %s32
      %s121 = sor.u32 %s119, %s120
      %p122 = scmp.eq.s32.totalorder %s121, 0
      %s124 = sadd.s32 %s123, 1
      %s125 = scalar_select %p122, %s123, %s124
      %p128 = pneg %p122
      %p129 = scmp.eq.s32.totalorder %s10, 1
      %p130 = por %p128, %p129
      %p131 = scmp.ne.s32.totalorder %s123, %s126
      %p132 = scmp.eq.s32.totalorder %s10, 0
      %p133 = por %p131, %p132
      %p134 = scmp.ne.s32.totalorder %s123, %s126
      %p135 = scmp.eq.s32.totalorder %s15, 1
      %p136 = por %p134, %p135
      %p137 = scmp.ne.s32.totalorder %s126, %s127
      %p138 = scmp.eq.s32.totalorder %s15, 0
      %p139 = por %p137, %p138
      %p140 = scmp.ne.s32.totalorder %s126, %s127
      %p141 = scmp.eq.s32.totalorder %s16, 1
      %p142 = por %p140, %p141
      %p144 = scmp.ne.s32.totalorder %s127, %s143
      %p145 = scmp.eq.s32.totalorder %s16, 0
      %p146 = por %p144, %p145
      %p147 = scmp.le.s32.totalorder 1, %s10
      %p148 = scmp.lt.s32.totalorder %s10, 3
      %p149 = pnand %p147, %p148
      %p150 = pneg %p149
      // Predicated region
      $region9: #{tpu_custom_call.1} parent=5 // pred_check
        _
      $region10: #{tpu_custom_call.1} parent=5 // pred_check_branch
        %152 = sbr.rel (%p149) target = $region12
      $region11: #{tpu_custom_call.1} parent=5 // pred_region
        %s153 = ssub.s32 %s10, 1
        // Predicated region
        $region13: #{tpu_custom_call.1} parent=11 // pred_check
          %p154 = pneg %p83
        $region14: #{tpu_custom_call.1} parent=11 // pred_check_branch
          %156 = sbr.rel (%p154) target = $region16
        $region15: #{tpu_custom_call.1} parent=11 // pred_region
          %s157 = smul.u32 4, %s21
          %s159 = ssub.s32 7680, 7680
          %160 = vsyncadd [#allocation3], %s159
          %s161 = smul.addr %s157, 128
          %s162 = scalar_lea.hbm %s1, %s161
          %s163 = sshll.u32 [#allocation2], 4
          %s164 = int_to_ptr.vmem [resolvable:$true] %s163
          %169 = dma.hbm_to_vmem [thread:$0]  %s162, 7680, %s164, [#allocation3], 512, 512, 32
        $region16: #{tpu_custom_call.1} parent=11 // pred_fallthru
          _
        // Predicated region
        $region17: #{tpu_custom_call.1} parent=11 // pred_check
          %p170 = pneg %p109
        $region18: #{tpu_custom_call.1} parent=11 // pred_check_branch
          %172 = sbr.rel (%p170) target = $region20
        $region19: #{tpu_custom_call.1} parent=11 // pred_region
          %s173 = smul.u32 4, %s21
          %p174 = scmp.lt.s32.totalorder %s173, 3
          %s175 = scalar_select %p174, %s173, 3
          %s176 = scalar_lea.vmem %s2, %s175
          %s177 = smul.u32 4, %s21
        $region20: #{tpu_custom_call.1} parent=11 // pred_fallthru
          _
      $region12: #{tpu_custom_call.1} parent=5 // pred_fallthru
        _
      %p178 = scmp.lt.s32.totalorder %s10, 2
      // Predicated region
      $region21: #{tpu_custom_call.1} parent=5 // pred_check
        %p179 = pneg %p178
      $region22: #{tpu_custom_call.1} parent=5 // pred_check_branch
        %181 = sbr.rel (%p179) target = $region24
      $region23: #{tpu_custom_call.1} parent=5 // pred_region
        // Predicated region
        $region25: #{tpu_custom_call.1} parent=23 // pred_check
          %p182 = pneg %p51
        $region26: #{tpu_custom_call.1} parent=23 // pred_check_branch
          %184 = sbr.rel (%p182) target = $region28
        $region27: #{tpu_custom_call.1} parent=23 // pred_region
          %s185 = smul.u32 2, %s19
          %p186 = scmp.lt.s32.totalorder %s17, 1
          %s187 = scalar_select %p186, %s17, 1
          %p188 = scmp.lt.s32.totalorder %s185, 1
          %s189 = scalar_select %p188, %s185, 1
          %s190 = smul.addr %s187, 2
          %s191 = sadd.s32 %s189, %s190
          %s192 = smul.addr %s191, 8
          %s193 = scalar_lea.vmem %s0, %s192
          %s194 = smul.u32 2, %s19
        $region28: #{tpu_custom_call.1} parent=23 // pred_fallthru
          _
      $region24: #{tpu_custom_call.1} parent=5 // pred_fallthru
        _
      %p195 = scmp.le.s32.totalorder 1, %s10
      %p196 = scmp.lt.s32.totalorder %s10, 3
      %p197 = pnand %p195, %p196
      %p198 = pneg %p197
      // Predicated region
      $region29: #{tpu_custom_call.1} parent=5 // pred_check
        _
      $region30: #{tpu_custom_call.1} parent=5 // pred_check_branch
        %200 = sbr.rel (%p197) target = $region32
      $region31: #{tpu_custom_call.1} parent=5 // pred_region
        %s201 = ssub.s32 %s10, 1
        // Predicated region
        $region33: #{tpu_custom_call.1} parent=31 // pred_check
          %p202 = pneg %p83
        $region34: #{tpu_custom_call.1} parent=31 // pred_check_branch
          %204 = sbr.rel (%p202) target = $region36
        $region35: #{tpu_custom_call.1} parent=31 // pred_region
          %205 = dma.done [#allocation3], 7680
        $region36: #{tpu_custom_call.1} parent=31 // pred_fallthru
          _
        %s206 = smul.u32 2, %s22
        %p207 = scmp.lt.s32.totalorder %s20, 1
        %s208 = scalar_select %p207, %s20, 1
        %p209 = scmp.lt.s32.totalorder %s206, 1
        %s210 = scalar_select %p209, %s206, 1
        %s211 = smul.addr %s208, 2
        %s212 = sadd.s32 %s210, %s211
        %s213 = smul.addr %s212, 8
        %s214 = scalar_lea.vmem %s0, %s213
        %p215 = pneg %p57
        %p216 = pneg %p54
        %p217 = pneg %p83
        %p218 = pneg %p80
        %s219 = smul.u32 4, %s21
        %p220 = scmp.lt.s32.totalorder %s219, 3
        %s221 = scalar_select %p220, %s219, 3
        %s222 = scalar_lea.vmem %s2, %s221
        %p223 = pneg %p109
        %p224 = pneg %p106
        %p225 = pneg %p139
        %p226 = pneg %p136
        %s227 = smul.u32 2, %s22
        %s228 = smul.u32 4, %s21
        %p229 = scmp.lt.s32.totalorder %s20, 1
        %s230 = scalar_select %p229, %s20, 1
        %p231 = scmp.lt.s32.totalorder %s227, 1
        %s232 = scalar_select %p231, %s227, 1
        %p233 = scmp.lt.s32.totalorder %s228, 3
        %s234 = scalar_select %p233, %s228, 3
        %s235 = smul.addr %s232, 4
        %s236 = sadd.s32 %s234, %s235
        %s237 = smul.addr %s230, 8
        %s238 = sadd.s32 %s236, %s237
        %s239 = smul.addr %s238, 8
        %s240 = scalar_lea.vmem %s3, %s239
        %s241 = smul.u32 2, %s22
        %p242 = scmp.lt.s32.totalorder %s20, 1
        %s243 = scalar_select %p242, %s20, 1
        %p244 = scmp.lt.s32.totalorder %s241, 1
        %s245 = scalar_select %p244, %s241, 1
        %s246 = smul.addr %s243, 2
        %s247 = sadd.s32 %s245, %s246
        %s248 = smul.addr %s247, 8
        %s249 = scalar_lea.vmem %s0, %s248
        %s250 = smul.u32 2, %s22
        %s251 = smul.u32 4, %s21
        %s252 = smul.u32 4, %s21
        %p253 = scmp.lt.s32.totalorder %s252, 3
        %s254 = scalar_select %p253, %s252, 3
        %s255 = scalar_lea.vmem %s2, %s254
        %s256 = smul.u32 4, %s21
        %s257 = smul.u32 2, %s22
        %s258 = smul.u32 4, %s21
        %p259 = scmp.lt.s32.totalorder %s20, 1
        %s260 = scalar_select %p259, %s20, 1
        %p261 = scmp.lt.s32.totalorder %s257, 1
        %s262 = scalar_select %p261, %s257, 1
        %p263 = scmp.lt.s32.totalorder %s258, 3
        %s264 = scalar_select %p263, %s258, 3
        %s265 = smul.addr %s262, 4
        %s266 = sadd.s32 %s264, %s265
        %s267 = smul.addr %s260, 8
        %s268 = sadd.s32 %s266, %s267
        %s269 = smul.addr %s268, 8
        %s270 = scalar_lea.vmem %s3, %s269
        %s271 = smul.u32 2, %s22
        %s272 = smul.u32 4, %s21
        %v273 = vld [vmem:[%s249] sm:$0xff]
        %v274 = vld [vmem:[%s249 + $0x8] sm:$0xf]
        %v275 = vld [vmem:[#allocation2] sm:$0xff]
        %v276 = vld [vmem:[#allocation2 + $0x8] sm:$0xff]
        %v277 = vld [vmem:[#allocation2 + $0x10] sm:$0xff]
        %v278 = vld [vmem:[#allocation2 + $0x18] sm:$0xff]
        %v279 = vld [vmem:[#allocation2 + $0x20] sm:$0xff]
        %v280 = vld [vmem:[#allocation2 + $0x28] sm:$0xff]
        %v281 = vld [vmem:[#allocation2 + $0x30] sm:$0xff]
        %v282 = vld [vmem:[#allocation2 + $0x38] sm:$0xff]
        %v283 = vld [vmem:[#allocation2 + $0x40] sm:$0xff]
        %v284 = vld [vmem:[#allocation2 + $0x48] sm:$0xff]
        %v285 = vld [vmem:[#allocation2 + $0x50] sm:$0xff]
        %v286 = vld [vmem:[#allocation2 + $0x58] sm:$0xff]
        %v287 = vld [vmem:[#allocation2 + $0x60] sm:$0xff]
        %v288 = vld [vmem:[#allocation2 + $0x68] sm:$0xff]
        %v289 = vld [vmem:[#allocation2 + $0x70] sm:$0xff]
        %v290 = vld [vmem:[#allocation2 + $0x78] sm:$0xff]
        %v291 = vld [vmem:[#allocation2 + $0x80] sm:$0xff]
        %v292 = vld [vmem:[#allocation2 + $0x88] sm:$0xff]
        %v293 = vld [vmem:[#allocation2 + $0x90] sm:$0xff]
        %v294 = vld [vmem:[#allocation2 + $0x98] sm:$0xff]
        %v295 = vld [vmem:[#allocation2 + $0xa0] sm:$0xff]
        %v296 = vld [vmem:[#allocation2 + $0xa8] sm:$0xff]
        %v297 = vld [vmem:[#allocation2 + $0xb0] sm:$0xff]
        %v298 = vld [vmem:[#allocation2 + $0xb8] sm:$0xff]
        %v299 = vld [vmem:[#allocation2 + $0xc0] sm:$0xff]
        %v300 = vld [vmem:[#allocation2 + $0xc8] sm:$0xff]
        %v301 = vld [vmem:[#allocation2 + $0xd0] sm:$0xff]
        %v302 = vld [vmem:[#allocation2 + $0xd8] sm:$0xff]
        %v303 = vld [vmem:[#allocation2 + $0xe0] sm:$0xff]
        %v304 = vld [vmem:[#allocation2 + $0xe8] sm:$0xff]
        %v305 = vld [vmem:[#allocation2 + $0xf0] sm:$0xff]
        %v306 = vld [vmem:[#allocation2 + $0xf8] sm:$0xff]
        %v307 = vld [vmem:[#allocation2 + $0x100] sm:$0xff]
        %v308 = vld [vmem:[#allocation2 + $0x108] sm:$0xff]
        %v309 = vld [vmem:[#allocation2 + $0x110] sm:$0xff]
        %v310 = vld [vmem:[#allocation2 + $0x118] sm:$0xff]
        %v311 = vld [vmem:[#allocation2 + $0x120] sm:$0xff]
        %v312 = vld [vmem:[#allocation2 + $0x128] sm:$0xff]
        %v313 = vld [vmem:[#allocation2 + $0x130] sm:$0xff]
        %v314 = vld [vmem:[#allocation2 + $0x138] sm:$0xff]
        %v315 = vld [vmem:[#allocation2 + $0x140] sm:$0xff]
        %v316 = vld [vmem:[#allocation2 + $0x148] sm:$0xff]
        %v317 = vld [vmem:[#allocation2 + $0x150] sm:$0xff]
        %v318 = vld [vmem:[#allocation2 + $0x158] sm:$0xff]
        %v319 = vld [vmem:[#allocation2 + $0x160] sm:$0xff]
        %v320 = vld [vmem:[#allocation2 + $0x168] sm:$0xff]
        %v321 = vld [vmem:[#allocation2 + $0x170] sm:$0xff]
        %v322 = vld [vmem:[#allocation2 + $0x178] sm:$0xff]
        %v323 = vld [vmem:[#allocation2 + $0x180] sm:$0xff]
        %v324 = vld [vmem:[#allocation2 + $0x188] sm:$0xff]
        %v325 = vld [vmem:[#allocation2 + $0x190] sm:$0xff]
        %v326 = vld [vmem:[#allocation2 + $0x198] sm:$0xff]
        %v327 = vld [vmem:[#allocation2 + $0x1a0] sm:$0xff]
        %v328 = vld [vmem:[#allocation2 + $0x1a8] sm:$0xff]
        %v329 = vld [vmem:[#allocation2 + $0x1b0] sm:$0xff]
        %v330 = vld [vmem:[#allocation2 + $0x1b8] sm:$0xff]
        %v331 = vld [vmem:[#allocation2 + $0x1c0] sm:$0x7]
        %v332 = vld [vmem:[#allocation2 + $0x1c8] sm:$0x7]
        %v333 = vld [vmem:[#allocation2 + $0x1d0] sm:$0x7]
        %v334 = vld [vmem:[#allocation2 + $0x1d8] sm:$0x7]
        %v335 = vld [vmem:[%s255] sm:$0xf]
        %v337 = vlaneseq
        %v338 = vshrl.u32 %v337, 7
        %v339 = vsub.s32 0, %v338
        %v340 = vrot.slane %v335, %v339
        %v341 = vlaneseq
        %v342 = vshrl.u32 %v341, 7
        %v343 = vsub.s32 1, %v342
        %v344 = vrot.slane %v335, %v343
        %v345 = vlaneseq
        %v346 = vshrl.u32 %v345, 7
        %v347 = vsub.s32 2, %v346
        %v348 = vrot.slane %v335, %v347
        %v349 = vlaneseq
        %v350 = vshrl.u32 %v349, 7
        %v351 = vsub.s32 3, %v350
        %v352 = vrot.slane %v335, %v351
        %vm357 = vcmask 941056
        %v359 = vsel %vm357, %v273, 0
        %v362 = vsel %vm357, %v274, 0
        %vm364 = vcmask 1042432
        %v366 = vsel %vm364, %v331, 0
        %v369 = vsel %vm364, %v332, 0
        %v372 = vsel %vm364, %v333, 0
        %v375 = vsel %vm364, %v334, 0
        %377 = vmatprep.subr.mxu0 0.0
        %378 = vmatpush1.msra.mxu0 0.0
        %379 = vmatprep.subr.mxu0 %v369
        %380 = vmatpush1.msra.mxu0 %v366
        %381 = vmatprep.subr.mxu0 %v328
        %382 = vmatpush1.msra.mxu0 %v327
        %383 = vmatprep.subr.mxu0 %v324
        %384 = vmatpush1.msra.mxu0 %v323
        %385 = vmatprep.subr.mxu0 %v320
        %386 = vmatpush1.msra.mxu0 %v319
        %387 = vmatprep.subr.mxu0 %v316
        %388 = vmatpush1.msra.mxu0 %v315
        %389 = vmatprep.subr.mxu0 %v312
        %390 = vmatpush1.msra.mxu0 %v311
        %391 = vmatprep.subr.mxu0 %v308
        %392 = vmatpush1.msra.mxu0 %v307
        %393 = vmatprep.subr.mxu0 %v304
        %394 = vmatpush1.msra.mxu0 %v303
        %395 = vmatprep.subr.mxu0 %v300
        %396 = vmatpush1.msra.mxu0 %v299
        %397 = vmatprep.subr.mxu0 %v296
        %398 = vmatpush1.msra.mxu0 %v295
        %399 = vmatprep.subr.mxu0 %v292
        %400 = vmatpush1.msra.mxu0 %v291
        %401 = vmatprep.subr.mxu0 %v288
        %402 = vmatpush1.msra.mxu0 %v287
        %403 = vmatprep.subr.mxu0 %v284
        %404 = vmatpush1.msra.mxu0 %v283
        %405 = vmatprep.subr.mxu0 %v280
        %406 = vmatpush1.msra.mxu0 %v279
        %407 = vmatprep.subr.mxu0 %v276
        %408 = vmatpush1.msra.mxu0 %v275
        %409 = vmatprep.subr.mxu0 0.0
        %410 = vmatpush2.msra.mxu0 0.0
        %411 = vmatprep.subr.mxu0 0.0
        %412 = vmatpush2.msra.mxu0 0.0
        %413 = vmatprep.subr.mxu0 0.0
        %414 = vmatpush2.msra.mxu0 0.0
        %415 = vmatprep.subr.mxu0 0.0
        %416 = vmatpush2.msra.mxu0 0.0
        %417 = vmatprep.subr.mxu0 0.0
        %418 = vmatpush2.msra.mxu0 0.0
        %419 = vmatprep.subr.mxu0 0.0
        %420 = vmatpush2.msra.mxu0 0.0
        %421 = vmatprep.subr.mxu0 0.0
        %422 = vmatpush2.msra.mxu0 0.0
        %423 = vmatprep.subr.mxu0 0.0
        %424 = vmatpush2.msra.mxu0 0.0
        %425 = vmatprep.subr.mxu0 0.0
        %426 = vmatpush2.msra.mxu0 0.0
        %427 = vmatprep.subr.mxu0 0.0
        %428 = vmatpush2.msra.mxu0 0.0
        %429 = vmatprep.subr.mxu0 0.0
        %430 = vmatpush2.msra.mxu0 0.0
        %431 = vmatprep.subr.mxu0 0.0
        %432 = vmatpush2.msra.mxu0 0.0
        %433 = vmatprep.subr.mxu0 0.0
        %434 = vmatpush2.msra.mxu0 0.0
        %435 = vmatprep.subr.mxu0 0.0
        %436 = vmatpush2.msra.mxu0 0.0
        %437 = vmatprep.subr.mxu0 0.0
        %438 = vmatpush2.msra.mxu0 0.0
        %439 = vmatprep.subr.mxu0 0.0
        %440 = vmatpush2.msra.mxu0 0.0
        %441 = vmatprep.mubr.f32.mxu0 0.0
        %442 = vmatmul.mubr.f32.gmra.mxu0 %v359
        %v443 = vpop.f32.mrf.mxu0
        %v444 = vadd.f32 %v340, %v443
        %v445 = vpop.f32.mrf.mxu0
        %v446 = vadd.f32 %v344, %v445
        %447 = vmatprep.mubr.f32.mxu0 0.0
        %448 = vmatmul.mubr.f32.gmra.mxu0 %v362
        %v449 = vpop.f32.mrf.mxu0
        %v450 = vadd.f32 %v340, %v449
        %v451 = vpop.f32.mrf.mxu0
        %v452 = vadd.f32 %v344, %v451
        %453 = vdwg.mxu0
        %454 = vmatprep.subr.mxu0 0.0
        %455 = vmatpush1.msra.mxu0 0.0
        %456 = vmatprep.subr.mxu0 %v375
        %457 = vmatpush1.msra.mxu0 %v372
        %458 = vmatprep.subr.mxu0 %v330
        %459 = vmatpush1.msra.mxu0 %v329
        %460 = vmatprep.subr.mxu0 %v326
        %461 = vmatpush1.msra.mxu0 %v325
        %462 = vmatprep.subr.mxu0 %v322
        %463 = vmatpush1.msra.mxu0 %v321
        %464 = vmatprep.subr.mxu0 %v318
        %465 = vmatpush1.msra.mxu0 %v317
        %466 = vmatprep.subr.mxu0 %v314
        %467 = vmatpush1.msra.mxu0 %v313
        %468 = vmatprep.subr.mxu0 %v310
        %469 = vmatpush1.msra.mxu0 %v309
        %470 = vmatprep.subr.mxu0 %v306
        %471 = vmatpush1.msra.mxu0 %v305
        %472 = vmatprep.subr.mxu0 %v302
        %473 = vmatpush1.msra.mxu0 %v301
        %474 = vmatprep.subr.mxu0 %v298
        %475 = vmatpush1.msra.mxu0 %v297
        %476 = vmatprep.subr.mxu0 %v294
        %477 = vmatpush1.msra.mxu0 %v293
        %478 = vmatprep.subr.mxu0 %v290
        %479 = vmatpush1.msra.mxu0 %v289
        %480 = vmatprep.subr.mxu0 %v286
        %481 = vmatpush1.msra.mxu0 %v285
        %482 = vmatprep.subr.mxu0 %v282
        %483 = vmatpush1.msra.mxu0 %v281
        %484 = vmatprep.subr.mxu0 %v278
        %485 = vmatpush1.msra.mxu0 %v277
        %486 = vmatprep.subr.mxu0 0.0
        %487 = vmatpush2.msra.mxu0 0.0
        %488 = vmatprep.subr.mxu0 0.0
        %489 = vmatpush2.msra.mxu0 0.0
        %490 = vmatprep.subr.mxu0 0.0
        %491 = vmatpush2.msra.mxu0 0.0
        %492 = vmatprep.subr.mxu0 0.0
        %493 = vmatpush2.msra.mxu0 0.0
        %494 = vmatprep.subr.mxu0 0.0
        %495 = vmatpush2.msra.mxu0 0.0
        %496 = vmatprep.subr.mxu0 0.0
        %497 = vmatpush2.msra.mxu0 0.0
        %498 = vmatprep.subr.mxu0 0.0
        %499 = vmatpush2.msra.mxu0 0.0
        %500 = vmatprep.subr.mxu0 0.0
        %501 = vmatpush2.msra.mxu0 0.0
        %502 = vmatprep.subr.mxu0 0.0
        %503 = vmatpush2.msra.mxu0 0.0
        %504 = vmatprep.subr.mxu0 0.0
        %505 = vmatpush2.msra.mxu0 0.0
        %506 = vmatprep.subr.mxu0 0.0
        %507 = vmatpush2.msra.mxu0 0.0
        %508 = vmatprep.subr.mxu0 0.0
        %509 = vmatpush2.msra.mxu0 0.0
        %510 = vmatprep.subr.mxu0 0.0
        %511 = vmatpush2.msra.mxu0 0.0
        %512 = vmatprep.subr.mxu0 0.0
        %513 = vmatpush2.msra.mxu0 0.0
        %514 = vmatprep.subr.mxu0 0.0
        %515 = vmatpush2.msra.mxu0 0.0
        %516 = vmatprep.subr.mxu0 0.0
        %517 = vmatpush2.msra.mxu0 0.0
        %518 = vmatprep.mubr.f32.mxu0 0.0
        %519 = vmatmul.mubr.f32.gmra.mxu0 %v359
        %v520 = vpop.f32.mrf.mxu0
        %v521 = vadd.f32 %v348, %v520
        %v522 = vpop.f32.mrf.mxu0
        %v523 = vadd.f32 %v352, %v522
        %524 = vmatprep.mubr.f32.mxu0 0.0
        %525 = vmatmul.mubr.f32.gmra.mxu0 %v362
        %v526 = vpop.f32.mrf.mxu0
        %v527 = vadd.f32 %v348, %v526
        %v528 = vpop.f32.mrf.mxu0
        %v529 = vadd.f32 %v352, %v528
        %530 = vdwg.mxu0
        %v531 = vmax.f32 %v444, 0.0
        %v532 = vmax.f32 %v446, 0.0
        %v533 = vmax.f32 %v521, 0.0
        %v534 = vmax.f32 %v523, 0.0
        %v535 = vmax.f32 %v450, 0.0
        %v536 = vmax.f32 %v452, 0.0
        %v537 = vmax.f32 %v527, 0.0
        %v538 = vmax.f32 %v529, 0.0
        %539 = vst [vmem:[%s270] sm:$0xff] %v531
        %540 = vst [vmem:[%s270 + $0x8] sm:$0xff] %v532
        %541 = vst [vmem:[%s270 + $0x10] sm:$0xff] %v533
        %542 = vst [vmem:[%s270 + $0x18] sm:$0xff] %v534
        %543 = vst [vmem:[%s270 + $0x20] sm:$0xf] %v535
        %544 = vst [vmem:[%s270 + $0x28] sm:$0xf] %v536
        %545 = vst [vmem:[%s270 + $0x30] sm:$0xf] %v537
        %546 = vst [vmem:[%s270 + $0x38] sm:$0xf] %v538
        %s547 = smul.u32 2, %s22
        %s548 = smul.u32 4, %s21
        %p549 = scmp.lt.s32.totalorder %s20, 1
        %s550 = scalar_select %p549, %s20, 1
        %p551 = scmp.lt.s32.totalorder %s547, 1
        %s552 = scalar_select %p551, %s547, 1
        %p553 = scmp.lt.s32.totalorder %s548, 3
        %s554 = scalar_select %p553, %s548, 3
        %s555 = smul.addr %s552, 4
        %s556 = sadd.s32 %s554, %s555
        %s557 = smul.addr %s550, 8
        %s558 = sadd.s32 %s556, %s557
        %s559 = smul.addr %s558, 8
        %s560 = scalar_lea.vmem %s3, %s559
        // Predicated region
        $region37: #{tpu_custom_call.1} parent=31 // pred_check
          %p561 = pneg %p136
        $region38: #{tpu_custom_call.1} parent=31 // pred_check_branch
          %563 = sbr.rel (%p561) target = $region40
        $region39: #{tpu_custom_call.1} parent=31 // pred_region
          %s564 = smul.u32 2, %s22
          %s565 = smul.u32 4, %s21
        $region40: #{tpu_custom_call.1} parent=31 // pred_fallthru
          _
      $region32: #{tpu_custom_call.1} parent=5 // pred_fallthru
        _
      %p566 = scmp.le.s32.totalorder 2, %s10
      // Predicated region
      $region41: #{tpu_custom_call.1} parent=5 // pred_check
        %p567 = pneg %p566
      $region42: #{tpu_custom_call.1} parent=5 // pred_check_branch
        %569 = sbr.rel (%p567) target = $region44
      $region43: #{tpu_custom_call.1} parent=5 // pred_region
        %s570 = ssub.s32 %s10, 2
        // Predicated region
        $region45: #{tpu_custom_call.1} parent=43 // pred_check
          %p571 = pneg %p142
        $region46: #{tpu_custom_call.1} parent=43 // pred_check_branch
          %573 = sbr.rel (%p571) target = $region48
        $region47: #{tpu_custom_call.1} parent=43 // pred_region
          %s574 = smul.u32 2, %s25
          %s575 = smul.u32 4, %s24
          %p576 = scmp.lt.s32.totalorder %s23, 1
          %s577 = scalar_select %p576, %s23, 1
          %p578 = scmp.lt.s32.totalorder %s574, 1
          %s579 = scalar_select %p578, %s574, 1
          %p580 = scmp.lt.s32.totalorder %s575, 3
          %s581 = scalar_select %p580, %s575, 3
          %s582 = smul.addr %s579, 4
          %s583 = sadd.s32 %s581, %s582
          %s584 = smul.addr %s577, 8
          %s585 = sadd.s32 %s583, %s584
          %s586 = smul.addr %s585, 8
          %s587 = scalar_lea.vmem %s3, %s586
        $region48: #{tpu_custom_call.1} parent=43 // pred_fallthru
          _
      $region44: #{tpu_custom_call.1} parent=5 // pred_fallthru
        _
    $region6: #{tpu_custom_call.1} parent=1 // loop_footer
      %s14 = sadd.s32 1, %s10
    $region7: #{tpu_custom_call.1} parent=1 // loop_footer_branch
      %9 = sbr.rel target = $region3
    $region8: #{tpu_custom_call.1} parent=1 // loop_exit
      _
    %588 = vsyncpa [#allocation3], 1
    %s589 = scalar_lea.sflag [#allocation3], 1
    %590 = vsyncpa %s589, 1

</llo_original>
